<compile_context>
chip_gen: v5e
topology: v5e:2x2
jax: 0.10.0
libtpu: 0.0.40
codegen_flags: <defaults>
</compile_context>

<pallas_src>
import functools

import numpy as np
import jax
import jax.numpy as jnp
from jax import lax
from jax.experimental import pallas as pl
from jax.experimental.pallas import tpu as pltpu


_PAD_MODE = {"constant": "constant", "reflect": "reflect",
             "replicate": "edge", "circular": "wrap"}


# ----------------------------------------------------------------------------
# Parameter setup (deterministic, static hyperparameters -> NumPy at trace time)
# ----------------------------------------------------------------------------
def get_motion_kernel2d(kernel_size: int, angle: float, direction: float) -> np.ndarray:
    assert isinstance(kernel_size, int) and kernel_size % 2 == 1 and kernel_size >= 3
    d = (float(np.clip(direction, -1.0, 1.0)) + 1.0) / 2.0
    base = np.zeros((kernel_size, kernel_size), dtype=np.float32)
    base[kernel_size // 2, :] = np.linspace(d, 1.0 - d, kernel_size, dtype=np.float32)

    # Nearest-neighbour rotation (inverse mapping) about the kernel center,
    # zeros outside -> kornia.rotate(..., mode='nearest') semantics.
    theta = np.deg2rad(float(angle))
    c = (kernel_size - 1) / 2.0
    ys, xs = np.meshgrid(np.arange(kernel_size), np.arange(kernel_size), indexing="ij")
    cos_t, sin_t = np.cos(theta), np.sin(theta)
    src_x = cos_t * (xs - c) - sin_t * (ys - c) + c
    src_y = sin_t * (xs - c) + cos_t * (ys - c) + c
    sx = np.rint(src_x).astype(np.int64)
    sy = np.rint(src_y).astype(np.int64)
    valid = (sx >= 0) & (sx < kernel_size) & (sy >= 0) & (sy < kernel_size)
    rot = np.where(
        valid,
        base[np.clip(sy, 0, kernel_size - 1), np.clip(sx, 0, kernel_size - 1)],
        0.0,
    ).astype(np.float32)
    return rot / rot.sum()


def _nonzero_taps(kernel_size, angle, direction):
    """((di, dj, weight), ...) for the ~k nonzero taps, as Python constants."""
    w2d = get_motion_kernel2d(kernel_size, angle, direction)
    taps = []
    for di in range(kernel_size):
        for dj in range(kernel_size):
            w = float(w2d[di, dj])
            if w != 0.0:
                taps.append((di, dj, w))
    return tuple(taps)


def _vmem_limit_bytes() -> int:
    """Generation-aware scoped-VMEM limit (~3/4 of physical per-core VMEM)."""
    try:
        cap = int(pltpu.get_tpu_info().vmem_capacity_bytes)
    except Exception:
        cap = 64 * 1024 * 1024  # conservative default (v7x per-TensorCore VMEM)
    return max(cap * 3 // 4, 32 * 1024 * 1024)


# ----------------------------------------------------------------------------
# Kernel bodies.  Layout everywhere: (image, H=sublanes, W=lanes).
# ----------------------------------------------------------------------------
def _mblur_const_kernel(x_ref, o_ref, xpad_ref, *, taps, p, H, W):
    """'constant' border: zero border built once per step in a f32 VMEM scratch.

    x_ref: (1, H, W) input block; o_ref: (1, H, W); xpad_ref: (H+2p, W+2p) f32.
    """
    Wp = W + 2 * p
    # Zero ONLY the border ring (2p rows + 2p cols, ~2% of the plane); the
    # (H, W) interior is fully overwritten below every step.  Unconditional
    # (not @pl.when(first step)) so each TensorCore's private scratch is valid
    # when the 'parallel' image axis is split across cores.
    zrow = jnp.zeros((p, Wp), jnp.float32)
    zcol = jnp.zeros((H, p), jnp.float32)
    xpad_ref[0:p, :] = zrow
    xpad_ref[p + H:p + H + p, :] = zrow
    xpad_ref[p:p + H, 0:p] = zcol
    xpad_ref[p:p + H, p + W:p + W + p] = zcol
    # One interior copy also hoists the input->f32 cast out of the tap loop.
    xpad_ref[p:p + H, p:p + W] = x_ref[0].astype(jnp.float32)

    # ~k nonzero taps baked as constants, statically unrolled.
    # TODO(synk): for large k on v7x, group taps sharing di and generate the dj
    #             shifts with pltpu.roll (XLU) to cut vld/VALU pressure.
    acc = None
    for di, dj, w in taps:
        t = w * xpad_ref[di:di + H, dj:dj + W]
        acc = t if acc is None else acc + t
    o_ref[0, :, :] = acc.astype(o_ref.dtype)


def _mblur_padded_kernel(x_ref, o_ref, *, taps, H, W):
    """Pre-padded input (non-constant borders): no scratch, taps read directly.

    x_ref: (1, H+2p, W+2p); o_ref: (1, H, W).
    """
    acc = None
    for di, dj, w in taps:
        # .astype is a no-op for f32 inputs; per-tap cast only for narrow dtypes.
        t = w * x_ref[0, di:di + H, dj:dj + W].astype(jnp.float32)
        acc = t if acc is None else acc + t
    o_ref[0, :, :] = acc.astype(o_ref.dtype)


def _mblur_strip_kernel(x_hbm, o_ref, buf_ref, sem, *, taps, p, Hs, W):
    """Strip-tiled path for large planes: halo window DMA'd from HBM per strip.

    x_hbm: full (N, Hpad, W+2p) pre-padded array left in HBM (pl.ANY);
    o_ref: (1, Hs, W) output block; buf_ref: (Hs+2p, W+2p) VMEM (input dtype).
    """
    n = pl.program_id(0)
    s = pl.program_id(1)
    row0 = s * Hs
    if Hs % 8 == 0:
        row0 = pl.multiple_of(row0, 8)
    cp = pltpu.make_async_copy(x_hbm.at[n, pl.ds(row0, Hs + 2 * p), :], buf_ref, sem)
    cp.start()
    cp.wait()
    # TODO(synk): double-buffer buf_ref and prefetch strip s+1 to hide the halo DMA.
    acc = None
    for di, dj, w in taps:
        t = w * buf_ref[di:di + Hs, dj:dj + W].astype(jnp.float32)
        acc = t if acc is None else acc + t
    o_ref[0, :, :] = acc.astype(o_ref.dtype)


# ----------------------------------------------------------------------------
# Wrapper
# ----------------------------------------------------------------------------
def motion_blur(x, kernel_size, angle, direction, border_type="constant",
                *, _force_strip_rows=None):
    assert border_type in _PAD_MODE
    B, C, H, W = x.shape
    p = kernel_size // 2
    Hp, Wp = H + 2 * p, W + 2 * p
    taps = _nonzero_taps(kernel_size, angle, direction)
    N = B * C
    isz = x.dtype.itemsize

    # NCHW kept: only a (free) reshape of the leading dims; W on lanes, H on sublanes.
    xf = jnp.reshape(x, (N, H, W))

    vmem_limit = _vmem_limit_bytes()
    cost = pl.CostEstimate(flops=2 * len(taps) * N * H * W,
                           transcendentals=0,
                           bytes_accessed=int(2 * N * H * W * isz))

    # VMEM estimate of the full-plane path (double-buffered in/out + scratch).
    if border_type == "constant":
        fullplane_bytes = 2 * H * W * isz + 2 * H * W * isz + Hp * Wp * 4
    else:
        fullplane_bytes = 2 * Hp * Wp * isz + 2 * H * W * isz
    use_strips = (_force_strip_rows is not None) or \
                 (fullplane_bytes > int(0.85 * vmem_limit))

    if not use_strips:
        # ----- full-plane path: one (H, W) image per grid step, grid over B*C -----
        if border_type == "constant":
            kern = functools.partial(_mblur_const_kernel, taps=taps, p=p, H=H, W=W)
            xin = xf
            in_block = (1, H, W)
            scratch = [pltpu.VMEM((Hp, Wp), jnp.float32)]
        else:
            # TODO(synk): fold reflect/replicate/circular borders into the kernel
            #             (clamped/mirrored tap offsets) to drop this extra HBM pass.
            xin = jnp.pad(xf, ((0, 0), (p, p), (p, p)), mode=_PAD_MODE[border_type])
            kern = functools.partial(_mblur_padded_kernel, taps=taps, H=H, W=W)
            in_block = (1, Hp, Wp)
            scratch = []

        out = pl.pallas_call(
            kern,
            out_shape=jax.ShapeDtypeStruct((N, H, W), x.dtype),
            grid_spec=pltpu.PrefetchScalarGridSpec(
                num_scalar_prefetch=0,
                grid=(N,),
                in_specs=[pl.BlockSpec(in_block, lambda n: (n, 0, 0))],
                out_specs=pl.BlockSpec((1, H, W), lambda n: (n, 0, 0)),
                scratch_shapes=scratch,
            ),
            compiler_params=pltpu.CompilerParams(
                dimension_semantics=("parallel",),
                vmem_limit_bytes=vmem_limit,
            ),
            cost_estimate=cost,
        )(xin)
        return jnp.reshape(out, (B, C, H, W))

    # ----- strip-tiled path (large planes / forced for testing) -----
    if _force_strip_rows is not None:
        Hs = int(_force_strip_rows)
    else:
        target = 2 * 1024 * 1024  # ~2 MiB halo buffer per strip
        Hs = max(8, (target // (Wp * isz)) // 8 * 8)
    Hs = min(Hs, ((H + 7) // 8) * 8)
    S = -(-H // Hs)
    # Pre-pad rows/cols once in HBM (zeros for 'constant'); extra bottom rows keep
    # every strip's halo DMA window in-bounds and statically sized.
    extra_bottom = S * Hs - H
    xin = jnp.pad(xf, ((0, 0), (p, p + extra_bottom), (p, p)),
                  mode=_PAD_MODE[border_type])

    kern = functools.partial(_mblur_strip_kernel, taps=taps, p=p, Hs=Hs, W=W)
    out = pl.pallas_call(
        kern,
        out_shape=jax.ShapeDtypeStruct((N, H, W), x.dtype),
        grid_spec=pltpu.PrefetchScalarGridSpec(
            num_scalar_prefetch=0,
            grid=(N, S),
            in_specs=[pl.BlockSpec(memory_space=pl.ANY)],   # stays in HBM; manual DMA
            out_specs=pl.BlockSpec((1, Hs, W), lambda n, s: (n, s, 0)),
            scratch_shapes=[pltpu.VMEM((Hs + 2 * p, Wp), x.dtype),
                            pltpu.SemaphoreType.DMA(())],
        ),
        compiler_params=pltpu.CompilerParams(
            dimension_semantics=("parallel", "arbitrary"),
            vmem_limit_bytes=vmem_limit,
        ),
        cost_estimate=cost,
    )(xin)
    return jnp.reshape(out, (B, C, H, W))


class MotionBlur:
    """Mirrors the PyTorch MotionBlur module's forward()."""

    def __init__(self, kernel_size, angle, direction, border_type="constant"):
        self.kernel_size = kernel_size
        self.angle = angle
        self.direction = direction
        self.border_type = border_type

    def __call__(self, x):
        return motion_blur(x, self.kernel_size, self.angle, self.direction,
                           self.border_type)


# ----------------------------------------------------------------------------
# Reference (pure JAX) for correctness checks
# ----------------------------------------------------------------------------
def _motion_blur_ref(x, kernel_size, angle, direction, border_type="constant"):
    B, C, H, W = x.shape
    p = kernel_size // 2
    xpad = jnp.pad(x, ((0, 0), (0, 0), (p, p), (p, p)), mode=_PAD_MODE[border_type])
    w2d = jnp.asarray(get_motion_kernel2d(kernel_size, angle, direction))
    wt = jnp.broadcast_to(w2d, (C, 1, kernel_size, kernel_size))
    return lax.conv_general_dilated(
        xpad, wt, window_strides=(1, 1), padding="VALID",
        dimension_numbers=("NCHW", "OIHW", "NCHW"), feature_group_count=C)


if __name__ == "__main__":
    key = jax.random.PRNGKey(0)
    B, C, H, W = 2, 4, 16, 16
    x = jax.random.normal(key, (B, C, H, W), dtype=jnp.float32)

    # Default 'constant' border (in-kernel zero padding, full-plane path).
    blur = MotionBlur(kernel_size=5, angle=45.0, direction=0.5, border_type="constant")
    out = jax.block_until_ready(blur(x))
    ref = jax.block_until_ready(_motion_blur_ref(x, 5, 45.0, 0.5, "constant"))
    assert out.shape == (B, C, H, W) and out.dtype == x.dtype
    np.testing.assert_allclose(np.asarray(out), np.asarray(ref), rtol=1e-5, atol=1e-5)

    # 'reflect' border (pre-padded, scratch-free path).
    out_r = jax.block_until_ready(motion_blur(x, 5, 45.0, 0.5, "reflect"))
    ref_r = jax.block_until_ready(_motion_blur_ref(x, 5, 45.0, 0.5, "reflect"))
    np.testing.assert_allclose(np.asarray(out_r), np.asarray(ref_r), rtol=1e-5, atol=1e-5)

    # Exercise the strip-tiled (large-plane) path on the small input.
    out_s = jax.block_until_ready(
        motion_blur(x, 5, 45.0, 0.5, "constant", _force_strip_rows=8))
    np.testing.assert_allclose(np.asarray(out_s), np.asarray(ref), rtol=1e-5, atol=1e-5)

    print("KERNEL_OK")
</pallas_src>

<mosaic_0001>
module attributes {stable_mosaic.version = 11 : i64} {
  func.func @_mblur_const_kernel(%arg0: i32, %arg1: memref<1x16x16xf32, #tpu.memory_space<vmem>>, %arg2: memref<1x16x16xf32, #tpu.memory_space<vmem>>, %arg3: memref<20x20xf32, #tpu.memory_space<vmem>>) attributes {dimension_semantics = [#tpu.dimension_semantics<parallel>], iteration_bounds = array<i64: 8>, scalar_prefetch = 0 : i64, scratch_operands = 1 : i64, tpu.core_type = #tpu.core_type<tc>, window_params = [{transform_indices = @transform_0, window_bounds = array<i64: 1, 16, 16>}, {transform_indices = @transform_1, window_bounds = array<i64: 1, 16, 16>}]} {
    %cst = arith.constant 0.000000e+00 : f32
    %0 = vector.broadcast %cst : f32 to vector<2x20xf32>
    %cst_0 = arith.constant 0.000000e+00 : f32
    %1 = vector.broadcast %cst_0 : f32 to vector<16x2xf32>
    %c0 = arith.constant 0 : index
    %c0_1 = arith.constant 0 : index
    %2 = vector.load %arg3[%c0, %c0_1] : memref<20x20xf32, #tpu.memory_space<vmem>>, vector<2x20xf32>
    tpu.vector_store %arg3[%c0, %c0_1], %0 {strides = array<i32>} : memref<20x20xf32, #tpu.memory_space<vmem>>, vector<2x20xf32>,
    %c18 = arith.constant 18 : index
    %c0_2 = arith.constant 0 : index
    %3 = vector.load %arg3[%c18, %c0_2] : memref<20x20xf32, #tpu.memory_space<vmem>>, vector<2x20xf32>
    tpu.vector_store %arg3[%c18, %c0_2], %0 {strides = array<i32>} : memref<20x20xf32, #tpu.memory_space<vmem>>, vector<2x20xf32>,
    %c2 = arith.constant 2 : index
    %c0_3 = arith.constant 0 : index
    %4 = vector.load %arg3[%c2, %c0_3] : memref<20x20xf32, #tpu.memory_space<vmem>>, vector<16x2xf32>
    tpu.vector_store %arg3[%c2, %c0_3], %1 {strides = array<i32>} : memref<20x20xf32, #tpu.memory_space<vmem>>, vector<16x2xf32>,
    %c2_4 = arith.constant 2 : index
    %c18_5 = arith.constant 18 : index
    %5 = vector.load %arg3[%c2_4, %c18_5] : memref<20x20xf32, #tpu.memory_space<vmem>>, vector<16x2xf32>
    tpu.vector_store %arg3[%c2_4, %c18_5], %1 {strides = array<i32>} : memref<20x20xf32, #tpu.memory_space<vmem>>, vector<16x2xf32>,
    %c0_6 = arith.constant 0 : index
    %c0_7 = arith.constant 0 : index
    %c0_8 = arith.constant 0 : index
    %6 = vector.load %arg1[%c0_6, %c0_7, %c0_8] : memref<1x16x16xf32, #tpu.memory_space<vmem>>, vector<1x16x16xf32>
    %7 = vector.shape_cast %6 : vector<1x16x16xf32> to vector<16x16xf32>
    %c2_9 = arith.constant 2 : index
    %c2_10 = arith.constant 2 : index
    %8 = vector.load %arg3[%c2_9, %c2_10] : memref<20x20xf32, #tpu.memory_space<vmem>>, vector<16x16xf32>
    tpu.vector_store %arg3[%c2_9, %c2_10], %7 {strides = array<i32>} : memref<20x20xf32, #tpu.memory_space<vmem>>, vector<16x16xf32>,
    %c1 = arith.constant 1 : index
    %c3 = arith.constant 3 : index
    %9 = vector.load %arg3[%c1, %c3] : memref<20x20xf32, #tpu.memory_space<vmem>>, vector<16x16xf32>
    %cst_11 = arith.constant 2.500000e-01 : f32
    %10 = vector.broadcast %cst_11 : f32 to vector<16x16xf32>
    %11 = arith.mulf %10, %9 : vector<16x16xf32>
    %c2_12 = arith.constant 2 : index
    %c2_13 = arith.constant 2 : index
    %12 = vector.load %arg3[%c2_12, %c2_13] : memref<20x20xf32, #tpu.memory_space<vmem>>, vector<16x16xf32>
    %cst_14 = arith.constant 0.333333343 : f32
    %13 = vector.broadcast %cst_14 : f32 to vector<16x16xf32>
    %14 = arith.mulf %13, %12 : vector<16x16xf32>
    %15 = arith.addf %11, %14 : vector<16x16xf32>
    %c3_15 = arith.constant 3 : index
    %c1_16 = arith.constant 1 : index
    %16 = vector.load %arg3[%c3_15, %c1_16] : memref<20x20xf32, #tpu.memory_space<vmem>>, vector<16x16xf32>
    %cst_17 = arith.constant 0.416666657 : f32
    %17 = vector.broadcast %cst_17 : f32 to vector<16x16xf32>
    %18 = arith.mulf %17, %16 : vector<16x16xf32>
    %19 = arith.addf %15, %18 : vector<16x16xf32>
    %c0_18 = arith.constant 0 : index
    %c0_19 = arith.constant 0 : index
    %c0_20 = arith.constant 0 : index
    %20 = vector.load %arg2[%c0_18, %c0_19, %c0_20] : memref<1x16x16xf32, #tpu.memory_space<vmem>>, vector<1x16x16xf32>
    %21 = vector.shape_cast %20 : vector<1x16x16xf32> to vector<16x16xf32>
    %22 = vector.shape_cast %19 : vector<16x16xf32> to vector<1x16x16xf32>
    tpu.vector_store %arg2[%c0_18, %c0_19, %c0_20], %22 {strides = array<i32>} : memref<1x16x16xf32, #tpu.memory_space<vmem>>, vector<1x16x16xf32>,
    return
  }
  func.func @transform_0(%arg0: i32) -> (i32, i32, i32) {
    %c0_i32 = arith.constant 0 : i32
    %c0_i32_0 = arith.constant 0 : i32
    %c0_i32_1 = arith.constant 0 : i32
    return %arg0, %c0_i32, %c0_i32_0 : i32, i32, i32
  }
  func.func @transform_1(%arg0: i32) -> (i32, i32, i32) {
    %c0_i32 = arith.constant 0 : i32
    %c0_i32_0 = arith.constant 0 : i32
    %c0_i32_1 = arith.constant 0 : i32
    return %arg0, %c0_i32, %c0_i32_0 : i32, i32, i32
  }
}

</mosaic_0001>

<llo_original>
// kernel: tpu_custom_call.1
$region0: #{tpu_custom_call.1}
  #allocation0 [shape = 'u32[]', space=smem, size = 0x4, offset = 0x4, fixed_abs, tag = 'smem constant byte address 0x4 - core index']
  #allocation1 [shape = 'u32[72,128]{1,0:T(1,128)}', space=vmem, size = 0x9000, scoped, tag = 'internal scratch']
  #allocation2 [shape = 'f32[20,20]{1,0:T(8,128)}', space=vmem, size = 0x3000, scoped, tag = 'scratch operand']
  %s0 = inlined_call_operand.hbm [shape: f32[8,16,16], index: 0, kind: input, shape index: {}]
  %s1 = inlined_call_operand.hbm [shape: f32[8,16,16], index: 1, kind: output, shape index: {}]
  %s2 = sld [smem:[#allocation0]]
  $region41: #{tpu_custom_call.1} parent=0
    _
  %s4 = ssub.s32 1, %s2
  %s5 = scalar_select 0, %s4, %s2
  $region1: #{tpu_custom_call.1} parent=0
    #allocation3 [shape = 'u8[16384]{0}', space=vmem, size = 0x4000, scoped, tag = 'input window, operand 0']
    #allocation4 [shape = 's32[2]{0}', space=sflag, size = 0x8, scoped, tag = 'scoped memory for tpu_custom_call.1']
    #allocation5 [shape = 's32[2]{0}', space=sflag, size = 0x8, scoped, tag = 'scoped memory for tpu_custom_call.1']
    #allocation6 [shape = 'u8[16384]{0}', space=vmem, size = 0x4000, scoped, tag = 'output window, operand 0']
    %6 = vsyncpa [#allocation4], 0
    %s7 = scalar_lea.sflag [#allocation4], 1
    %8 = vsyncpa %s7, 0
    %9 = vsyncpa [#allocation5], 0
    %s10 = scalar_lea.sflag [#allocation5], 1
    %11 = vsyncpa %s10, 0
    loop: start=0, step=1, limit=10
    $region2: #{tpu_custom_call.1} parent=1 // loop_pre_header
      _
    $region3: #{tpu_custom_call.1} parent=1 // loop_header
      %s13 = sphi 0, %s17
      %p14 = scmp.ge.s32.totalorder %s13, 10
      %s23 = sphi 0, %s25
      %s26 = sphi 0, %s23
      %s27 = sphi 0, %s26
      %s43 = sphi 0, %s27
      %s49 = sphi 0, %s51
      %s52 = sphi 0, %s49
      %s53 = sphi 0, %s52
      %s69 = sphi 0, %s53
    $region4: #{tpu_custom_call.1} parent=1 // loop_header_branch
      %16 = sbr.rel (%p14) target = $region8
    $region5: #{tpu_custom_call.1} parent=1 // loop_body
      %s18 = ssub.s32 %s13, 1
      %s19 = ssub.s32 %s13, 2
      %s20 = sadd.s32 %s13, 1
      %s21 = ssub.s32 %s13, %s20
      %p22 = scmp.eq.s32.totalorder %s21, 0
      %s24 = sadd.s32 %s23, 1
      %s25 = scalar_select %p22, %s23, %s24
      %p28 = pneg %p22
      %p29 = scmp.eq.s32.totalorder %s13, 7
      %p30 = por %p28, %p29
      %p31 = scmp.ne.s32.totalorder %s23, %s26
      %p32 = scmp.eq.s32.totalorder %s13, 0
      %p33 = por %p31, %p32
      %p34 = scmp.ne.s32.totalorder %s23, %s26
      %p35 = scmp.eq.s32.totalorder %s18, 7
      %p36 = por %p34, %p35
      %p37 = scmp.ne.s32.totalorder %s26, %s27
      %p38 = scmp.eq.s32.totalorder %s18, 0
      %p39 = por %p37, %p38
      %p40 = scmp.ne.s32.totalorder %s26, %s27
      %p41 = scmp.eq.s32.totalorder %s19, 7
      %p42 = por %p40, %p41
      %p44 = scmp.ne.s32.totalorder %s27, %s43
      %p45 = scmp.eq.s32.totalorder %s19, 0
      %p46 = por %p44, %p45
      %s47 = ssub.s32 %s13, %s20
      %p48 = scmp.eq.s32.totalorder %s47, 0
      %s50 = sadd.s32 %s49, 1
      %s51 = scalar_select %p48, %s49, %s50
      %p54 = pneg %p48
      %p55 = scmp.eq.s32.totalorder %s13, 7
      %p56 = por %p54, %p55
      %p57 = scmp.ne.s32.totalorder %s49, %s52
      %p58 = scmp.eq.s32.totalorder %s13, 0
      %p59 = por %p57, %p58
      %p60 = scmp.ne.s32.totalorder %s49, %s52
      %p61 = scmp.eq.s32.totalorder %s18, 7
      %p62 = por %p60, %p61
      %p63 = scmp.ne.s32.totalorder %s52, %s53
      %p64 = scmp.eq.s32.totalorder %s18, 0
      %p65 = por %p63, %p64
      %p66 = scmp.ne.s32.totalorder %s52, %s53
      %p67 = scmp.eq.s32.totalorder %s19, 7
      %p68 = por %p66, %p67
      %p70 = scmp.ne.s32.totalorder %s53, %s69
      %p71 = scmp.eq.s32.totalorder %s19, 0
      %p72 = por %p70, %p71
      %p73 = scmp.le.s32.totalorder 1, %s13
      %p74 = scmp.lt.s32.totalorder %s13, 9
      %p75 = pnand %p73, %p74
      %p76 = pneg %p75
      // Predicated region
      $region9: #{tpu_custom_call.1} parent=5 // pred_check
        _
      $region10: #{tpu_custom_call.1} parent=5 // pred_check_branch
        %78 = sbr.rel (%p75) target = $region12
      $region11: #{tpu_custom_call.1} parent=5 // pred_region
        %s79 = ssub.s32 %s13, 1
      $region12: #{tpu_custom_call.1} parent=5 // pred_fallthru
        _
      %p80 = scmp.lt.s32.totalorder %s13, 8
      // Predicated region
      $region13: #{tpu_custom_call.1} parent=5 // pred_check
        %p81 = pneg %p80
      $region14: #{tpu_custom_call.1} parent=5 // pred_check_branch
        %83 = sbr.rel (%p81) target = $region16
      $region15: #{tpu_custom_call.1} parent=5 // pred_region
        // Predicated region
        $region17: #{tpu_custom_call.1} parent=15 // pred_check
          %p84 = pneg %p33
        $region18: #{tpu_custom_call.1} parent=15 // pred_check_branch
          %86 = sbr.rel (%p84) target = $region20
        $region19: #{tpu_custom_call.1} parent=15 // pred_region
          %s87 = sand.u32 %s23, 1
          %s88 = scalar_lea.sflag [#allocation4], %s87
          %s89 = sand.u32 %s23, 1
          %s90 = smul.addr %s89, 16
          %s91 = scalar_lea.vmem [#allocation3], %s90
          %93 = vsyncadd %s88, 0
          %s94 = smul.addr %s13, 2
          %s95 = smul.addr %s94, 8
          %s96 = scalar_lea.hbm %s0, %s95
          %s97 = sshll.u32 %s96, 4
          %s98 = int_to_ptr.hbm [resolvable:$true] %s97
          %s99 = sshll.u32 %s91, 4
          %s100 = int_to_ptr.vmem [resolvable:$true] %s99
          %105 = dma.hbm_to_vmem [thread:$0]  %s98, 256, %s100, %s88, 128, 128, 8
        $region20: #{tpu_custom_call.1} parent=15 // pred_fallthru
          _
      $region16: #{tpu_custom_call.1} parent=5 // pred_fallthru
        _
      %p106 = scmp.le.s32.totalorder 1, %s13
      %p107 = scmp.lt.s32.totalorder %s13, 9
      %p108 = pnand %p106, %p107
      %p109 = pneg %p108
      // Predicated region
      $region21: #{tpu_custom_call.1} parent=5 // pred_check
        _
      $region22: #{tpu_custom_call.1} parent=5 // pred_check_branch
        %111 = sbr.rel (%p108) target = $region24
      $region23: #{tpu_custom_call.1} parent=5 // pred_region
        %s112 = ssub.s32 %s13, 1
        %s113 = sand.u32 %s26, 1
        %s114 = scalar_lea.sflag [#allocation4], %s113
        %s115 = sand.u32 %s26, 1
        %s116 = smul.addr %s115, 16
        %s117 = scalar_lea.vmem [#allocation3], %s116
        // Predicated region
        $region25: #{tpu_custom_call.1} parent=23 // pred_check
          %p118 = pneg %p39
        $region26: #{tpu_custom_call.1} parent=23 // pred_check_branch
          %120 = sbr.rel (%p118) target = $region28
        $region27: #{tpu_custom_call.1} parent=23 // pred_region
          %122 = dma.done %s114, 256
        $region28: #{tpu_custom_call.1} parent=23 // pred_fallthru
          _
        %s123 = sand.u32 %s26, 1
        %s124 = scalar_lea.sflag [#allocation4], %s123
        %s125 = sand.u32 %s26, 1
        %s126 = smul.addr %s125, 16
        %s127 = scalar_lea.vmem [#allocation3], %s126
        %p128 = pneg %p39
        %p129 = pneg %p36
        %p130 = pneg %p65
        %p131 = pneg %p62
        %s132 = sand.u32 %s52, 1
        %s133 = scalar_lea.sflag [#allocation5], %s132
        %s134 = sand.u32 %s52, 1
        %s135 = smul.addr %s134, 16
        %s136 = scalar_lea.vmem [#allocation6], %s135
        %vm137 = vcmask 156672
        %138 = vst.msk [vmem:[#allocation2] sm:$0x3] %vm137, 0.0
        %139 = vst.msk [vmem:[#allocation2 + $0x12] sm:$0x3] %vm137, 0.0
        %vm140 = vcmask 15360
        %141 = vst.msk [vmem:[#allocation2 + $0x2] sm:$0xff] %vm140, 0.0
        %142 = vst.msk [vmem:[#allocation2 + $0xa] sm:$0xff] %vm140, 0.0
        %vm143 = vcmask 162960
        %144 = vst.msk [vmem:[#allocation2 + $0x2] sm:$0xff] %vm143, 0.0
        %145 = vst.msk [vmem:[#allocation2 + $0xa] sm:$0xff] %vm143, 0.0
        %v146 = vld [vmem:[%s117] sm:$0xff]
        %v147 = vld [vmem:[%s117 + $0x8] sm:$0xff]
        %150 = vrot.lane.b32.xlu0 %v146, 2
        %v151 = vpop.permute.xlu0 %150
        %152 = vrot.lane.b32.xlu0 %v147, 2
        %v153 = vpop.permute.xlu0 %152
        %vm156 = vcmask 146448
        %157 = vst.msk [vmem:[#allocation2 + $0x2] sm:$0xff] %vm156, %v151
        %158 = vst.msk [vmem:[#allocation2 + $0xa] sm:$0xff] %vm156, %v153
        %v159 = vld [vmem:[#allocation2 + $0x1] sm:$0xff]
        %v160 = vld [vmem:[#allocation2 + $0x9] sm:$0xff]
        %v161 = vmul.f32 %v159, 0.25
        %v162 = vmul.f32 %v160, 0.25
        %v163 = vld [vmem:[#allocation2 + $0x2] sm:$0xff]
        %v164 = vld [vmem:[#allocation2 + $0xa] sm:$0xff]
        %v165 = vmul.f32 %v163, 0.33333334
        %v166 = vmul.f32 %v164, 0.33333334
        %169 = vrot.lane.b32.xlu0 %v165, 1
        %v170 = vpop.permute.xlu0 %169
        %171 = vrot.lane.b32.xlu0 %v166, 1
        %v172 = vpop.permute.xlu0 %171
        %v175 = vadd.f32 %v161, %v170
        %v176 = vadd.f32 %v162, %v172
        %v177 = vld [vmem:[#allocation2 + $0x3] sm:$0xff]
        %v178 = vld [vmem:[#allocation2 + $0xb] sm:$0xff]
        %v179 = vmul.f32 %v177, 0.41666666
        %v180 = vmul.f32 %v178, 0.41666666
        %183 = vrot.lane.b32.xlu0 %v179, 2
        %v184 = vpop.permute.xlu0 %183
        %185 = vrot.lane.b32.xlu0 %v180, 2
        %v186 = vpop.permute.xlu0 %185
        %v189 = vadd.f32 %v175, %v184
        %v190 = vadd.f32 %v176, %v186
        %193 = vrot.lane.b32.xlu0 %v189, 125
        %v194 = vpop.permute.xlu0 %193
        %195 = vrot.lane.b32.xlu0 %v190, 125
        %v196 = vpop.permute.xlu0 %195
        %vm199 = vcmask 130048
        %200 = vst.msk [vmem:[%s136] sm:$0xff] %vm199, %v194
        %201 = vst.msk [vmem:[%s136 + $0x8] sm:$0xff] %vm199, %v196
        %s202 = sand.u32 %s52, 1
        %s203 = scalar_lea.sflag [#allocation5], %s202
        %s204 = sand.u32 %s52, 1
        %s205 = smul.addr %s204, 16
        %s206 = scalar_lea.vmem [#allocation6], %s205
        // Predicated region
        $region29: #{tpu_custom_call.1} parent=23 // pred_check
          %p207 = pneg %p62
        $region30: #{tpu_custom_call.1} parent=23 // pred_check_branch
          %209 = sbr.rel (%p207) target = $region32
        $region31: #{tpu_custom_call.1} parent=23 // pred_region
          %211 = vsyncadd %s203, 0
          %s212 = smul.addr %s18, 2
          %s213 = smul.addr %s212, 8
          %s214 = scalar_lea.hbm %s1, %s213
          %s215 = sshll.u32 %s206, 4
          %s216 = int_to_ptr.vmem [resolvable:$true] %s215
          %s217 = sshll.u32 %s214, 4
          %s218 = int_to_ptr.hbm [resolvable:$true] %s217
          %223 = dma.vmem_to_hbm [thread:$0]  %s216, 256, %s218, %s203, 128, 128, 8
        $region32: #{tpu_custom_call.1} parent=23 // pred_fallthru
          _
      $region24: #{tpu_custom_call.1} parent=5 // pred_fallthru
        _
      %p224 = scmp.le.s32.totalorder 2, %s13
      // Predicated region
      $region33: #{tpu_custom_call.1} parent=5 // pred_check
        %p225 = pneg %p224
      $region34: #{tpu_custom_call.1} parent=5 // pred_check_branch
        %227 = sbr.rel (%p225) target = $region36
      $region35: #{tpu_custom_call.1} parent=5 // pred_region
        %s228 = ssub.s32 %s13, 2
        // Predicated region
        $region37: #{tpu_custom_call.1} parent=35 // pred_check
          %p229 = pneg %p68
        $region38: #{tpu_custom_call.1} parent=35 // pred_check_branch
          %231 = sbr.rel (%p229) target = $region40
        $region39: #{tpu_custom_call.1} parent=35 // pred_region
          %s232 = sand.u32 %s53, 1
          %s233 = scalar_lea.sflag [#allocation5], %s232
          %s234 = sand.u32 %s53, 1
          %s235 = smul.addr %s234, 16
          %s236 = scalar_lea.vmem [#allocation6], %s235
          %238 = dma.done %s233, 256
        $region40: #{tpu_custom_call.1} parent=35 // pred_fallthru
          _
      $region36: #{tpu_custom_call.1} parent=5 // pred_fallthru
        _
    $region6: #{tpu_custom_call.1} parent=1 // loop_footer
      %s17 = sadd.s32 1, %s13
    $region7: #{tpu_custom_call.1} parent=1 // loop_footer_branch
      %12 = sbr.rel target = $region3
    $region8: #{tpu_custom_call.1} parent=1 // loop_exit
      _
    %239 = vsyncpa [#allocation4], 1
    %s240 = scalar_lea.sflag [#allocation4], 1
    %241 = vsyncpa %s240, 1
    %242 = vsyncpa [#allocation5], 1
    %s243 = scalar_lea.sflag [#allocation5], 1
    %244 = vsyncpa %s243, 1

</llo_original>
